<compile_context>
chip_gen: v7x
topology: tpu7x:2x2x1
jax: 0.10.0
libtpu: 0.0.40
codegen_flags: <defaults>
</compile_context>

<pallas_src>
import math

import jax
import jax.numpy as jnp
from jax.experimental import pallas as pl
from jax.experimental.pallas import tpu as pltpu

LN_EPS = 1e-5      # torch.nn.LayerNorm default eps
L2_EPS = 1e-12     # avoids NaN on zero-padded rows (those rows are sliced away)


def _round_up(x, m):
    return ((x + m - 1) // m) * m


def _make_grounding_kernel(Bt, Nv_p, Nt_p, Dv_p, Dw_p, Dv, Dw, mm_dtype):
    """Build the kernel processing Bt samples per grid step."""
    inv_dv = 1.0 / float(Dv)
    inv_dw = 1.0 / float(Dw)

    def kernel(v_ref, t_ref, pv_ref, bv_ref, pt_ref, bt_ref, scale_ref, out_ref):
        # Merge the per-step sample dim into the row dim: one VPU pass for all
        # samples and a bigger MXU M-dim for the projection matmuls.
        v = v_ref[...].astype(jnp.float32).reshape(Bt * Nv_p, Dv_p)
        t = t_ref[...].astype(jnp.float32).reshape(Bt * Nt_p, Dw_p)

        # LayerNorm statistics over the TRUE feature width.  Padded feature
        # columns are exactly zero, so plain sums are already the true sums;
        # the one-pass E[x^2]-mu^2 form avoids the padded (0-mu)^2 terms a
        # two-pass variance would pick up.
        v_mu = jnp.sum(v, axis=-1, keepdims=True) * inv_dv
        v_var = jnp.sum(v * v, axis=-1, keepdims=True) * inv_dv - v_mu * v_mu
        v_hat = (v - v_mu) * jax.lax.rsqrt(v_var + LN_EPS)

        t_mu = jnp.sum(t, axis=-1, keepdims=True) * inv_dw
        t_var = jnp.sum(t * t, axis=-1, keepdims=True) * inv_dw - t_mu * t_mu
        t_hat = (t - t_mu) * jax.lax.rsqrt(t_var + LN_EPS)

        # LayerNorm affine folded into weights/bias by the wrapper:
        # (x_hat*w + b) @ P == x_hat @ (w[:,None]*P) + (b @ P).
        # LN garbage in padded columns of x_hat multiplies zero weight rows.
        v_p = jnp.dot(v_hat.astype(mm_dtype), pv_ref[...],
                      preferred_element_type=jnp.float32) + bv_ref[...]    # (Bt*Nv_p, Dw_p)
        t_p = jnp.dot(t_hat.astype(mm_dtype), pt_ref[...],
                      preferred_element_type=jnp.float32) + bt_ref[...]    # (Bt*Nt_p, Dw_p)

        # L2 row-normalization in f32 (eps -> no NaN on padded rows).
        v_u = v_p * jax.lax.rsqrt(jnp.sum(v_p * v_p, axis=-1, keepdims=True) + L2_EPS)
        t_u = t_p * jax.lax.rsqrt(jnp.sum(t_p * t_p, axis=-1, keepdims=True) + L2_EPS)

        # Apply exp(logit_scale) to the small text matrix instead of the
        # (Nt_p, Nv_p) output tile -> saves a VPU pass over the largest tile.
        t_u = t_u * scale_ref[0]

        # Per-sample similarity, emitted directly in (Nt, Nv) orientation.
        # Kept in f32 (it is the smallest matmul) even on the bf16 path.
        t_u3 = t_u.reshape(Bt, Nt_p, Dw_p)
        v_u3 = v_u.reshape(Bt, Nv_p, Dw_p)
        logits = jnp.einsum('bqd,bkd->bqk', t_u3, v_u3,
                            preferred_element_type=jnp.float32)            # (Bt, Nt_p, Nv_p)
        out_ref[...] = logits.astype(out_ref.dtype)

    return kernel


def _pick_bt(B, Nv_p, Nt_p, Dv_p, Dw_p, in_bytes, out_bytes, weight_bytes):
    """Largest samples-per-step that fits a conservative VMEM budget and still
    leaves >=2 grid steps (so both v7x TensorCores get work)."""
    budget = 24 * 1024 * 1024   # headroom vs v7x (64 MiB physical / 32 MiB scoped)
    for bt in (8, 4, 2, 1):
        if bt > B:
            continue
        tiles = 2 * bt * ((Nv_p * Dv_p + Nt_p * Dw_p) * in_bytes
                          + Nt_p * Nv_p * out_bytes)          # double-buffered in+out
        if weight_bytes + tiles > budget:
            continue
        steps = -(-B // bt)
        if B >= 2 and steps < 2:
            continue
        return bt
    return 1


def visual_object_grounding_forward(text_feature, visual_features, params, *,
                                    matmul_dtype=jnp.float32,
                                    out_dtype=jnp.float32):
    """Mirrors Visual_Object_Grounding.forward: lists in -> (list of logits, visual_features)."""
    B = len(visual_features)
    Nv_list = [int(v.shape[0]) for v in visual_features]
    Nt_list = [int(t.shape[0]) for t in text_feature]
    Dv = int(visual_features[0].shape[1])
    Dw = int(text_feature[0].shape[1])

    # Lane/sublane-friendly padding: boxes (output lane dim) and both feature
    # dims to multiples of 128, tokens (sublane dim) to a multiple of 8.
    Nv_p = _round_up(max(Nv_list), 128)
    Nt_p = _round_up(max(Nt_list), 8)
    Dv_p = _round_up(Dv, 128)
    Dw_p = _round_up(Dw, 128)

    # bf16 fast path also DMAs the activations in bf16; LN/L2 math stays f32.
    in_dtype = jnp.bfloat16 if matmul_dtype == jnp.bfloat16 else jnp.float32
    in_bytes = jnp.dtype(in_dtype).itemsize
    out_bytes = jnp.dtype(out_dtype).itemsize
    mm_bytes = jnp.dtype(matmul_dtype).itemsize
    weight_bytes = (Dv_p * Dw_p + Dw_p * Dw_p) * mm_bytes + 2 * Dw_p * 4

    Bt = _pick_bt(B, Nv_p, Nt_p, Dv_p, Dw_p, in_bytes, out_bytes, weight_bytes)
    G = -(-B // Bt)
    B_p = G * Bt

    # --- stack / pad activations ---------------------------------------------
    # TODO(synk): hoist this pad/stack (and the final per-sample slicing) out of
    # the hot path if callers can provide pre-padded batches + true lengths.
    if all(n == Nv_list[0] for n in Nv_list):
        v_stack = jnp.pad(jnp.stack([v.astype(in_dtype) for v in visual_features]),
                          ((0, B_p - B), (0, Nv_p - Nv_list[0]), (0, Dv_p - Dv)))
    else:
        v_stack = jnp.zeros((B_p, Nv_p, Dv_p), in_dtype)
        for i, v in enumerate(visual_features):
            v_stack = v_stack.at[i, :Nv_list[i], :Dv].set(v.astype(in_dtype))
    if all(n == Nt_list[0] for n in Nt_list):
        t_stack = jnp.pad(jnp.stack([t.astype(in_dtype) for t in text_feature]),
                          ((0, B_p - B), (0, Nt_p - Nt_list[0]), (0, Dw_p - Dw)))
    else:
        t_stack = jnp.zeros((B_p, Nt_p, Dw_p), in_dtype)
        for i, t in enumerate(text_feature):
            t_stack = t_stack.at[i, :Nt_list[i], :Dw].set(t.astype(in_dtype))

    # --- fold LayerNorm affine into the projections --------------------------
    f32 = jnp.float32
    proj_v = params["proj_v"].astype(f32)
    proj_t = params["text_projection"].astype(f32)
    pv = params["v_ln_w"].astype(f32)[:, None] * proj_v              # (Dv, Dw)
    bv = params["v_ln_b"].astype(f32) @ proj_v                       # (Dw,)
    pt = params["t_ln_w"].astype(f32)[:, None] * proj_t              # (Dw, Dw)
    bt_ = params["t_ln_b"].astype(f32) @ proj_t                      # (Dw,)

    pv_p = jnp.zeros((Dv_p, Dw_p), f32).at[:Dv, :Dw].set(pv).astype(matmul_dtype)
    pt_p = jnp.zeros((Dw_p, Dw_p), f32).at[:Dw, :Dw].set(pt).astype(matmul_dtype)
    bv_p = jnp.zeros((1, Dw_p), f32).at[0, :Dw].set(bv)
    bt_p = jnp.zeros((1, Dw_p), f32).at[0, :Dw].set(bt_)
    scale = jnp.exp(params["logit_scale"]).reshape(1).astype(f32)    # exp once; SMEM scalar

    kernel = _make_grounding_kernel(Bt, Nv_p, Nt_p, Dv_p, Dw_p, Dv, Dw, matmul_dtype)

    flops = 2 * B_p * (Nv_p * Dv_p * Dw_p + Nt_p * Dw_p * Dw_p + Nt_p * Dw_p * Nv_p)
    bytes_accessed = (v_stack.size * in_bytes + t_stack.size * in_bytes
                      + (pv_p.size + pt_p.size) * mm_bytes
                      + (bv_p.size + bt_p.size) * 4
                      + B_p * Nt_p * Nv_p * out_bytes)
    cost = pl.CostEstimate(flops=int(flops),
                           transcendentals=int(2 * B_p * (Nv_p + Nt_p)),
                           bytes_accessed=int(bytes_accessed))

    tile_bytes = Bt * ((Nv_p * Dv_p + Nt_p * Dw_p) * in_bytes + Nt_p * Nv_p * out_bytes)
    vmem_limit = int(min(max(weight_bytes + 2 * tile_bytes + (4 << 20), 16 << 20), 48 << 20))

    out = pl.pallas_call(
        kernel,
        out_shape=jax.ShapeDtypeStruct((B_p, Nt_p, Nv_p), out_dtype),
        grid=(G,),
        in_specs=[
            pl.BlockSpec((Bt, Nv_p, Dv_p), lambda b: (b, 0, 0)),     # visual activations
            pl.BlockSpec((Bt, Nt_p, Dw_p), lambda b: (b, 0, 0)),     # text activations
            pl.BlockSpec((Dv_p, Dw_p), lambda b: (0, 0)),            # folded visual proj (resident)
            pl.BlockSpec((1, Dw_p), lambda b: (0, 0)),               # folded visual bias
            pl.BlockSpec((Dw_p, Dw_p), lambda b: (0, 0)),            # folded text proj (resident)
            pl.BlockSpec((1, Dw_p), lambda b: (0, 0)),               # folded text bias
            pl.BlockSpec(memory_space=pltpu.MemorySpace.SMEM),       # exp(logit_scale)
        ],
        out_specs=pl.BlockSpec((Bt, Nt_p, Nv_p), lambda b: (b, 0, 0)),
        compiler_params=pltpu.CompilerParams(
            dimension_semantics=("parallel",),
            vmem_limit_bytes=vmem_limit),
        cost_estimate=cost,
    )(v_stack, t_stack, pv_p, bv_p, pt_p, bt_p, scale)

    # Slice back to the true per-sample (Nt, Nv); padded rows/cols are dropped.
    semantic_logprob = [out[i, :Nt_list[i], :Nv_list[i]] for i in range(B)]
    return semantic_logprob, visual_features


def _reference_forward(text_feature, visual_features, params):
    """Pure-JAX reference of the PyTorch forward (sanity check)."""
    def enc_v(v):
        mu = jnp.mean(v, -1, keepdims=True)
        var = jnp.mean((v - mu) ** 2, -1, keepdims=True)
        vn = (v - mu) / jnp.sqrt(var + LN_EPS) * params["v_ln_w"] + params["v_ln_b"]
        return vn @ params["proj_v"]

    def enc_t(t):
        mu = jnp.mean(t, -1, keepdims=True)
        var = jnp.mean((t - mu) ** 2, -1, keepdims=True)
        tn = (t - mu) / jnp.sqrt(var + LN_EPS) * params["t_ln_w"] + params["t_ln_b"]
        return tn @ params["text_projection"]

    def mul(v, t):
        v_ = v / jnp.linalg.norm(v, axis=-1, keepdims=True)
        t_ = t / jnp.linalg.norm(t, axis=-1, keepdims=True)
        return (jnp.exp(params["logit_scale"]) * v_ @ t_.T).T

    return [mul(enc_v(v), enc_t(t)) for v, t in zip(visual_features, text_feature)]


def make_params(key, v_embd_dim, w_embd_dim):
    k1, k2 = jax.random.split(key)
    w_scale = w_embd_dim ** (-0.5)
    return {
        "logit_scale": jnp.asarray(math.log(1.0 / 0.07), jnp.float32),
        "proj_v": (w_scale * jax.random.normal(k1, (v_embd_dim, w_embd_dim))).astype(jnp.float32),
        "text_projection": (w_scale * jax.random.normal(k2, (w_embd_dim, w_embd_dim))).astype(jnp.float32),
        # LayerNorm default init: weight=1, bias=0
        "v_ln_w": jnp.ones((v_embd_dim,), jnp.float32),
        "v_ln_b": jnp.zeros((v_embd_dim,), jnp.float32),
        "t_ln_w": jnp.ones((w_embd_dim,), jnp.float32),
        "t_ln_b": jnp.zeros((w_embd_dim,), jnp.float32),
    }


if __name__ == "__main__":
    v_embd_dim, w_embd_dim = 64, 32          # visual / word embedding dims
    n_boxes = [8, 5]                         # ragged per-sample box counts
    n_text = [4, 3]                          # ragged per-sample token counts
    n_samples = len(n_boxes)

    key = jax.random.PRNGKey(0)
    kp, kv, kt = jax.random.split(key, 3)
    params = make_params(kp, v_embd_dim, w_embd_dim)

    kvs = jax.random.split(kv, n_samples)
    kts = jax.random.split(kt, n_samples)
    visual_features = [jax.random.normal(kvs[i], (n_boxes[i], v_embd_dim), jnp.float32)
                       for i in range(n_samples)]
    text_feature = [jax.random.normal(kts[i], (n_text[i], w_embd_dim), jnp.float32)
                    for i in range(n_samples)]

    ref = _reference_forward(text_feature, visual_features, params)

    # --- f32 MXU operands: tight check vs. the reference ---------------------
    logits, vis_out = visual_object_grounding_forward(
        text_feature, visual_features, params, matmul_dtype=jnp.float32)
    logits = [jax.block_until_ready(l) for l in logits]
    for i, (got, want) in enumerate(zip(logits, ref)):
        assert got.shape == want.shape == (n_text[i], n_boxes[i])
        assert bool(jnp.all(jnp.isfinite(got)))
        assert jnp.allclose(got, want, atol=1e-3, rtol=1e-3)

    # --- bf16 MXU operands (v6e/v7x fast path): loose check -------------------
    logits_bf16, _ = visual_object_grounding_forward(
        text_feature, visual_features, params, matmul_dtype=jnp.bfloat16)
    logits_bf16 = [jax.block_until_ready(l) for l in logits_bf16]
    for i, (got, want) in enumerate(zip(logits_bf16, ref)):
        assert got.shape == want.shape == (n_text[i], n_boxes[i])
        assert bool(jnp.all(jnp.isfinite(got)))
        assert jnp.allclose(got, want, atol=0.6, rtol=5e-2)

    print("KERNEL_OK")
</pallas_src>

<mosaic_0001>
module attributes {stable_mosaic.version = 11 : i64} {
  func.func @kernel(%arg0: i32, %arg1: memref<1x128x128xf32, #tpu.memory_space<vmem>>, %arg2: memref<1x8x128xf32, #tpu.memory_space<vmem>>, %arg3: memref<128x128xf32, #tpu.memory_space<vmem>>, %arg4: memref<1x128xf32, #tpu.memory_space<vmem>>, %arg5: memref<128x128xf32, #tpu.memory_space<vmem>>, %arg6: memref<1x128xf32, #tpu.memory_space<vmem>>, %arg7: memref<1xf32, #tpu.memory_space<smem>>, %arg8: memref<1x8x128xf32, #tpu.memory_space<vmem>>) attributes {dimension_semantics = [#tpu.dimension_semantics<parallel>], iteration_bounds = array<i64: 2>, scalar_prefetch = 0 : i64, scratch_operands = 0 : i64, tpu.core_type = #tpu.core_type<tc>, window_params = [{transform_indices = @transform_0, window_bounds = array<i64: 1, 128, 128>}, {transform_indices = @transform_1, window_bounds = array<i64: 1, 8, 128>}, {pipeline_mode = #tpu.pipeline_mode<synchronous>, transform_indices = @transform_2, window_bounds = array<i64: 128, 128>}, {pipeline_mode = #tpu.pipeline_mode<synchronous>, transform_indices = @transform_3, window_bounds = array<i64: 1, 128>}, {pipeline_mode = #tpu.pipeline_mode<synchronous>, transform_indices = @transform_4, window_bounds = array<i64: 128, 128>}, {pipeline_mode = #tpu.pipeline_mode<synchronous>, transform_indices = @transform_5, window_bounds = array<i64: 1, 128>}, {transform_indices = @transform_6, window_bounds = array<i64: 1>}, {transform_indices = @transform_7, window_bounds = array<i64: 1, 8, 128>}]} {
    %c0 = arith.constant 0 : index
    %c0_0 = arith.constant 0 : index
    %c0_1 = arith.constant 0 : index
    %0 = vector.load %arg1[%c0, %c0_0, %c0_1] : memref<1x128x128xf32, #tpu.memory_space<vmem>>, vector<1x128x128xf32>
    %1 = vector.shape_cast %0 : vector<1x128x128xf32> to vector<128x128xf32>
    %c0_2 = arith.constant 0 : index
    %c0_3 = arith.constant 0 : index
    %c0_4 = arith.constant 0 : index
    %2 = vector.load %arg2[%c0_2, %c0_3, %c0_4] : memref<1x8x128xf32, #tpu.memory_space<vmem>>, vector<1x8x128xf32>
    %3 = vector.shape_cast %2 : vector<1x8x128xf32> to vector<8x128xf32>
    %cst = arith.constant dense<0.000000e+00> : vector<128xf32>
    %4 = vector.multi_reduction <add>, %1, %cst [1] : vector<128x128xf32> to vector<128xf32>
    %5 = vector.shape_cast %4 : vector<128xf32> to vector<128x1xf32>
    %cst_5 = arith.constant 1.562500e-02 : f32
    %6 = vector.broadcast %cst_5 : f32 to vector<128x1xf32>
    %7 = arith.mulf %5, %6 : vector<128x1xf32>
    %8 = arith.mulf %1, %1 : vector<128x128xf32>
    %cst_6 = arith.constant dense<0.000000e+00> : vector<128xf32>
    %9 = vector.multi_reduction <add>, %8, %cst_6 [1] : vector<128x128xf32> to vector<128xf32>
    %10 = vector.shape_cast %9 : vector<128xf32> to vector<128x1xf32>
    %cst_7 = arith.constant 1.562500e-02 : f32
    %11 = vector.broadcast %cst_7 : f32 to vector<128x1xf32>
    %12 = arith.mulf %10, %11 : vector<128x1xf32>
    %13 = arith.mulf %7, %7 : vector<128x1xf32>
    %14 = arith.subf %12, %13 : vector<128x1xf32>
    %15 = vector.broadcast %7 : vector<128x1xf32> to vector<128x128xf32>
    %16 = arith.subf %1, %15 : vector<128x128xf32>
    %cst_8 = arith.constant 9.99999974E-6 : f32
    %17 = vector.broadcast %cst_8 : f32 to vector<128x1xf32>
    %18 = arith.addf %14, %17 : vector<128x1xf32>
    %19 = math.rsqrt %18 : vector<128x1xf32>
    %20 = vector.broadcast %19 : vector<128x1xf32> to vector<128x128xf32>
    %21 = arith.mulf %16, %20 : vector<128x128xf32>
    %cst_9 = arith.constant dense<0.000000e+00> : vector<8xf32>
    %22 = vector.multi_reduction <add>, %3, %cst_9 [1] : vector<8x128xf32> to vector<8xf32>
    %23 = vector.shape_cast %22 : vector<8xf32> to vector<8x1xf32>
    %cst_10 = arith.constant 3.125000e-02 : f32
    %24 = vector.broadcast %cst_10 : f32 to vector<8x1xf32>
    %25 = arith.mulf %23, %24 : vector<8x1xf32>
    %26 = arith.mulf %3, %3 : vector<8x128xf32>
    %cst_11 = arith.constant dense<0.000000e+00> : vector<8xf32>
    %27 = vector.multi_reduction <add>, %26, %cst_11 [1] : vector<8x128xf32> to vector<8xf32>
    %28 = vector.shape_cast %27 : vector<8xf32> to vector<8x1xf32>
    %cst_12 = arith.constant 3.125000e-02 : f32
    %29 = vector.broadcast %cst_12 : f32 to vector<8x1xf32>
    %30 = arith.mulf %28, %29 : vector<8x1xf32>
    %31 = arith.mulf %25, %25 : vector<8x1xf32>
    %32 = arith.subf %30, %31 : vector<8x1xf32>
    %33 = vector.broadcast %25 : vector<8x1xf32> to vector<8x128xf32>
    %34 = arith.subf %3, %33 : vector<8x128xf32>
    %cst_13 = arith.constant 9.99999974E-6 : f32
    %35 = vector.broadcast %cst_13 : f32 to vector<8x1xf32>
    %36 = arith.addf %32, %35 : vector<8x1xf32>
    %37 = math.rsqrt %36 : vector<8x1xf32>
    %38 = vector.broadcast %37 : vector<8x1xf32> to vector<8x128xf32>
    %39 = arith.mulf %34, %38 : vector<8x128xf32>
    %c0_14 = arith.constant 0 : index
    %c0_15 = arith.constant 0 : index
    %40 = vector.load %arg3[%c0_14, %c0_15] : memref<128x128xf32, #tpu.memory_space<vmem>>, vector<128x128xf32>
    %cst_16 = arith.constant dense<0.000000e+00> : vector<128x128xf32>
    %41 = tpu.matmul %21, %40, %cst_16 {dimension_numbers = #tpu.dot_dimension_numbers<[1], [0], [0], [1], [0, 0, 1, 1], [], []>} : vector<128x128xf32>, vector<128x128xf32>, vector<128x128xf32> -> vector<128x128xf32>
    %c0_17 = arith.constant 0 : index
    %c0_18 = arith.constant 0 : index
    %42 = vector.load %arg4[%c0_17, %c0_18] : memref<1x128xf32, #tpu.memory_space<vmem>>, vector<1x128xf32>
    %43 = vector.broadcast %42 : vector<1x128xf32> to vector<128x128xf32>
    %44 = arith.addf %41, %43 : vector<128x128xf32>
    %c0_19 = arith.constant 0 : index
    %c0_20 = arith.constant 0 : index
    %45 = vector.load %arg5[%c0_19, %c0_20] : memref<128x128xf32, #tpu.memory_space<vmem>>, vector<128x128xf32>
    %cst_21 = arith.constant dense<0.000000e+00> : vector<8x128xf32>
    %46 = tpu.matmul %39, %45, %cst_21 {dimension_numbers = #tpu.dot_dimension_numbers<[1], [0], [0], [1], [0, 0, 1, 1], [], []>} : vector<8x128xf32>, vector<128x128xf32>, vector<8x128xf32> -> vector<8x128xf32>
    %c0_22 = arith.constant 0 : index
    %c0_23 = arith.constant 0 : index
    %47 = vector.load %arg6[%c0_22, %c0_23] : memref<1x128xf32, #tpu.memory_space<vmem>>, vector<1x128xf32>
    %48 = vector.broadcast %47 : vector<1x128xf32> to vector<8x128xf32>
    %49 = arith.addf %46, %48 : vector<8x128xf32>
    %50 = arith.mulf %44, %44 : vector<128x128xf32>
    %cst_24 = arith.constant dense<0.000000e+00> : vector<128xf32>
    %51 = vector.multi_reduction <add>, %50, %cst_24 [1] : vector<128x128xf32> to vector<128xf32>
    %52 = vector.shape_cast %51 : vector<128xf32> to vector<128x1xf32>
    %cst_25 = arith.constant 9.99999996E-13 : f32
    %53 = vector.broadcast %cst_25 : f32 to vector<128x1xf32>
    %54 = arith.addf %52, %53 : vector<128x1xf32>
    %55 = math.rsqrt %54 : vector<128x1xf32>
    %56 = vector.broadcast %55 : vector<128x1xf32> to vector<128x128xf32>
    %57 = arith.mulf %44, %56 : vector<128x128xf32>
    %58 = arith.mulf %49, %49 : vector<8x128xf32>
    %cst_26 = arith.constant dense<0.000000e+00> : vector<8xf32>
    %59 = vector.multi_reduction <add>, %58, %cst_26 [1] : vector<8x128xf32> to vector<8xf32>
    %60 = vector.shape_cast %59 : vector<8xf32> to vector<8x1xf32>
    %cst_27 = arith.constant 9.99999996E-13 : f32
    %61 = vector.broadcast %cst_27 : f32 to vector<8x1xf32>
    %62 = arith.addf %60, %61 : vector<8x1xf32>
    %63 = math.rsqrt %62 : vector<8x1xf32>
    %64 = vector.broadcast %63 : vector<8x1xf32> to vector<8x128xf32>
    %65 = arith.mulf %49, %64 : vector<8x128xf32>
    %c0_28 = arith.constant 0 : index
    %66 = memref.load %arg7[%c0_28] : memref<1xf32, #tpu.memory_space<smem>>
    %67 = vector.broadcast %66 : f32 to vector<8x128xf32>
    %68 = arith.mulf %65, %67 : vector<8x128xf32>
    %69 = vector.shape_cast %68 : vector<8x128xf32> to vector<1x8x128xf32>
    %70 = vector.shape_cast %57 : vector<128x128xf32> to vector<1x128x128xf32>
    "tpu.trace_start"() <{level = 10 : i32, message = "bqd,bkd->bqk"}> : () -> ()
    %cst_29 = arith.constant dense<0.000000e+00> : vector<1x8x128xf32>
    %71 = tpu.matmul %69, %70, %cst_29 {dimension_numbers = #tpu.dot_dimension_numbers<[2], [2], [1], [1], [0, 0, 0, 1, 1, 1], [0], [0]>} : vector<1x8x128xf32>, vector<1x128x128xf32>, vector<1x8x128xf32> -> vector<1x8x128xf32>
    "tpu.trace_stop"() : () -> ()
    %c0_30 = arith.constant 0 : index
    %c0_31 = arith.constant 0 : index
    %c0_32 = arith.constant 0 : index
    %72 = vector.load %arg8[%c0_30, %c0_31, %c0_32] : memref<1x8x128xf32, #tpu.memory_space<vmem>>, vector<1x8x128xf32>
    tpu.vector_store %arg8[%c0_30, %c0_31, %c0_32], %71 {strides = array<i32>} : memref<1x8x128xf32, #tpu.memory_space<vmem>>, vector<1x8x128xf32>,
    return
  }
  func.func @transform_0(%arg0: i32) -> (i32, i32, i32) {
    %c0_i32 = arith.constant 0 : i32
    %c0_i32_0 = arith.constant 0 : i32
    %c0_i32_1 = arith.constant 0 : i32
    return %arg0, %c0_i32, %c0_i32_0 : i32, i32, i32
  }
  func.func @transform_1(%arg0: i32) -> (i32, i32, i32) {
    %c0_i32 = arith.constant 0 : i32
    %c0_i32_0 = arith.constant 0 : i32
    %c0_i32_1 = arith.constant 0 : i32
    return %arg0, %c0_i32, %c0_i32_0 : i32, i32, i32
  }
  func.func @transform_2(%arg0: i32) -> (i32, i32) {
    %c0_i32 = arith.constant 0 : i32
    %c0_i32_0 = arith.constant 0 : i32
    %c0_i32_1 = arith.constant 0 : i32
    return %c0_i32, %c0_i32_0 : i32, i32
  }
  func.func @transform_3(%arg0: i32) -> (i32, i32) {
    %c0_i32 = arith.constant 0 : i32
    %c0_i32_0 = arith.constant 0 : i32
    %c0_i32_1 = arith.constant 0 : i32
    return %c0_i32, %c0_i32_0 : i32, i32
  }
  func.func @transform_4(%arg0: i32) -> (i32, i32) {
    %c0_i32 = arith.constant 0 : i32
    %c0_i32_0 = arith.constant 0 : i32
    %c0_i32_1 = arith.constant 0 : i32
    return %c0_i32, %c0_i32_0 : i32, i32
  }
  func.func @transform_5(%arg0: i32) -> (i32, i32) {
    %c0_i32 = arith.constant 0 : i32
    %c0_i32_0 = arith.constant 0 : i32
    %c0_i32_1 = arith.constant 0 : i32
    return %c0_i32, %c0_i32_0 : i32, i32
  }
  func.func @transform_6(%arg0: i32) -> i32 {
    %c0_i32 = arith.constant 0 : i32
    %c0_i32_0 = arith.constant 0 : i32
    return %c0_i32 : i32
  }
  func.func @transform_7(%arg0: i32) -> (i32, i32, i32) {
    %c0_i32 = arith.constant 0 : i32
    %c0_i32_0 = arith.constant 0 : i32
    %c0_i32_1 = arith.constant 0 : i32
    return %arg0, %c0_i32, %c0_i32_0 : i32, i32, i32
  }
}

</mosaic_0001>

<llo_original>
// kernel: tpu_custom_call.1
$region0: #{tpu_custom_call.1}
  #allocation0 [shape = 'u32[]', space=smem, size = 0x4, offset = 0x4, fixed_abs, tag = 'smem constant byte address 0x4 - core index']
  #allocation1 [shape = 'u32[144,128]{1,0:T(1,128)}', space=vmem, size = 0x12000, scoped, tag = 'internal scratch']
  #allocation2 [shape = 'f32[1]{0:T(128)S(6)}', space=smem, size = 0x200, scoped, tag = 'scoped memory for tpu_custom_call.1']
  %s0 = inlined_call_operand.hbm [shape: f32[2,128,128], index: 0, kind: input, shape index: {}]
  %s1 = inlined_call_operand.hbm [shape: f32[2,8,128], index: 1, kind: input, shape index: {}]
  %s2 = inlined_call_operand.hbm [shape: f32[128,128], index: 2, kind: input, shape index: {}]
  %s3 = inlined_call_operand.vmem [shape: f32[1,128], index: 3, kind: input, shape index: {}]
  %s4 = inlined_call_operand.hbm [shape: f32[128,128], index: 4, kind: input, shape index: {}]
  %s5 = inlined_call_operand.vmem [shape: f32[1,128], index: 5, kind: input, shape index: {}]
  %s6 = inlined_call_operand.<no memory space> [shape: f32[1], index: 6, kind: input, shape index: {}]
  %s7 = inlined_call_operand.hbm [shape: f32[2,8,128], index: 7, kind: output, shape index: {}]
  %s8 = sld [smem:[#allocation0]]
  $region77: #{tpu_custom_call.1} parent=0
    _
  %s10 = ssub.s32 1, %s8
  %s11 = scalar_select 0, %s10, %s8
  %12 = sst [smem:[#allocation2]] %s6
  $region1: #{tpu_custom_call.1} parent=0
    #allocation3 [shape = 'u8[131072]{0}', space=vmem, size = 0x20000, scoped, tag = 'input window, operand 0']
    #allocation4 [shape = 's32[2]{0}', space=sflag, size = 0x8, scoped, tag = 'scoped memory for tpu_custom_call.1']
    #allocation5 [shape = 's32[2]{0}', space=sflag, size = 0x8, scoped, tag = 'scoped memory for tpu_custom_call.1']
    #allocation6 [shape = 'u8[8192]{0}', space=vmem, size = 0x2000, scoped, tag = 'input window, operand 1']
    #allocation7 [shape = 's32[2]{0}', space=sflag, size = 0x8, scoped, tag = 'scoped memory for tpu_custom_call.1']
    #allocation8 [shape = 'u8[65536]{0}', space=vmem, size = 0x10000, scoped, tag = 'input window, operand 2, single buffered']
    #allocation9 [shape = 'u8[65536]{0}', space=vmem, size = 0x10000, scoped, tag = 'input window, operand 4, single buffered']
    #allocation10 [shape = 's32[1]{0}', space=sflag, size = 0x4, scoped, tag = 'scoped memory for tpu_custom_call.1']
    #allocation11 [shape = 'u8[8192]{0}', space=vmem, size = 0x2000, scoped, tag = 'output window, operand 0']
    %13 = vsyncpa [#allocation4], 0
    %s14 = scalar_lea.sflag [#allocation4], 1
    %15 = vsyncpa %s14, 0
    %16 = vsyncpa [#allocation7], 0
    %s17 = scalar_lea.sflag [#allocation7], 1
    %18 = vsyncpa %s17, 0
    %19 = vsyncpa [#allocation10], 0
    %20 = vsyncpa [#allocation5], 0
    %s21 = scalar_lea.sflag [#allocation5], 1
    %22 = vsyncpa %s21, 0
    loop: start=0, step=1, limit=4
    $region2: #{tpu_custom_call.1} parent=1 // loop_pre_header
      _
    $region3: #{tpu_custom_call.1} parent=1 // loop_header
      %s24 = sphi 0, %s28
      %p25 = scmp.ge.s32.totalorder %s24, 4
      %s34 = sphi 0, %s36
      %s37 = sphi 0, %s34
      %s38 = sphi 0, %s37
      %s54 = sphi 0, %s38
      %s60 = sphi 0, %s62
      %s63 = sphi 0, %s60
      %s64 = sphi 0, %s63
      %s80 = sphi 0, %s64
      %s84 = sphi 0, %s84
      %s86 = sphi 0, %s84
      %s87 = sphi 0, %s86
      %s101 = sphi 0, %s87
      %s105 = sphi 0, %s105
      %s107 = sphi 0, %s105
      %s108 = sphi 0, %s107
      %s122 = sphi 0, %s108
      %s126 = sphi 0, %s126
      %s128 = sphi 0, %s126
      %s129 = sphi 0, %s128
      %s143 = sphi 0, %s129
      %s147 = sphi 0, %s147
      %s149 = sphi 0, %s147
      %s150 = sphi 0, %s149
      %s164 = sphi 0, %s150
      %s168 = sphi 0, %s168
      %s170 = sphi 0, %s168
      %s171 = sphi 0, %s170
      %s185 = sphi 0, %s171
      %s191 = sphi 0, %s193
      %s194 = sphi 0, %s191
      %s195 = sphi 0, %s194
      %s211 = sphi 0, %s195
    $region4: #{tpu_custom_call.1} parent=1 // loop_header_branch
      %27 = sbr.rel (%p25) target = $region8
    $region5: #{tpu_custom_call.1} parent=1 // loop_body
      %s29 = ssub.s32 %s24, 1
      %s30 = ssub.s32 %s24, 2
      %s31 = sadd.s32 %s24, 1
      %s32 = ssub.s32 %s24, %s31
      %p33 = scmp.eq.s32.totalorder %s32, 0
      %s35 = sadd.s32 %s34, 1
      %s36 = scalar_select %p33, %s34, %s35
      %p39 = pneg %p33
      %p40 = scmp.eq.s32.totalorder %s24, 1
      %p41 = por %p39, %p40
      %p42 = scmp.ne.s32.totalorder %s34, %s37
      %p43 = scmp.eq.s32.totalorder %s24, 0
      %p44 = por %p42, %p43
      %p45 = scmp.ne.s32.totalorder %s34, %s37
      %p46 = scmp.eq.s32.totalorder %s29, 1
      %p47 = por %p45, %p46
      %p48 = scmp.ne.s32.totalorder %s37, %s38
      %p49 = scmp.eq.s32.totalorder %s29, 0
      %p50 = por %p48, %p49
      %p51 = scmp.ne.s32.totalorder %s37, %s38
      %p52 = scmp.eq.s32.totalorder %s30, 1
      %p53 = por %p51, %p52
      %p55 = scmp.ne.s32.totalorder %s38, %s54
      %p56 = scmp.eq.s32.totalorder %s30, 0
      %p57 = por %p55, %p56
      %s58 = ssub.s32 %s24, %s31
      %p59 = scmp.eq.s32.totalorder %s58, 0
      %s61 = sadd.s32 %s60, 1
      %s62 = scalar_select %p59, %s60, %s61
      %p65 = pneg %p59
      %p66 = scmp.eq.s32.totalorder %s24, 1
      %p67 = por %p65, %p66
      %p68 = scmp.ne.s32.totalorder %s60, %s63
      %p69 = scmp.eq.s32.totalorder %s24, 0
      %p70 = por %p68, %p69
      %p71 = scmp.ne.s32.totalorder %s60, %s63
      %p72 = scmp.eq.s32.totalorder %s29, 1
      %p73 = por %p71, %p72
      %p74 = scmp.ne.s32.totalorder %s63, %s64
      %p75 = scmp.eq.s32.totalorder %s29, 0
      %p76 = por %p74, %p75
      %p77 = scmp.ne.s32.totalorder %s63, %s64
      %p78 = scmp.eq.s32.totalorder %s30, 1
      %p79 = por %p77, %p78
      %p81 = scmp.ne.s32.totalorder %s64, %s80
      %p82 = scmp.eq.s32.totalorder %s30, 0
      %p83 = por %p81, %p82
      %s85 = sadd.s32 %s84, 1
      %p88 = scmp.eq.s32.totalorder %s24, 1
      %p89 = scmp.ne.s32.totalorder %s84, %s86
      %p90 = scmp.eq.s32.totalorder %s24, 0
      %p91 = por %p89, %p90
      %p92 = scmp.ne.s32.totalorder %s84, %s86
      %p93 = scmp.eq.s32.totalorder %s29, 1
      %p94 = por %p92, %p93
      %p95 = scmp.ne.s32.totalorder %s86, %s87
      %p96 = scmp.eq.s32.totalorder %s29, 0
      %p97 = por %p95, %p96
      %p98 = scmp.ne.s32.totalorder %s86, %s87
      %p99 = scmp.eq.s32.totalorder %s30, 1
      %p100 = por %p98, %p99
      %p102 = scmp.ne.s32.totalorder %s87, %s101
      %p103 = scmp.eq.s32.totalorder %s30, 0
      %p104 = por %p102, %p103
      %s106 = sadd.s32 %s105, 1
      %p109 = scmp.eq.s32.totalorder %s24, 1
      %p110 = scmp.ne.s32.totalorder %s105, %s107
      %p111 = scmp.eq.s32.totalorder %s24, 0
      %p112 = por %p110, %p111
      %p113 = scmp.ne.s32.totalorder %s105, %s107
      %p114 = scmp.eq.s32.totalorder %s29, 1
      %p115 = por %p113, %p114
      %p116 = scmp.ne.s32.totalorder %s107, %s108
      %p117 = scmp.eq.s32.totalorder %s29, 0
      %p118 = por %p116, %p117
      %p119 = scmp.ne.s32.totalorder %s107, %s108
      %p120 = scmp.eq.s32.totalorder %s30, 1
      %p121 = por %p119, %p120
      %p123 = scmp.ne.s32.totalorder %s108, %s122
      %p124 = scmp.eq.s32.totalorder %s30, 0
      %p125 = por %p123, %p124
      %s127 = sadd.s32 %s126, 1
      %p130 = scmp.eq.s32.totalorder %s24, 1
      %p131 = scmp.ne.s32.totalorder %s126, %s128
      %p132 = scmp.eq.s32.totalorder %s24, 0
      %p133 = por %p131, %p132
      %p134 = scmp.ne.s32.totalorder %s126, %s128
      %p135 = scmp.eq.s32.totalorder %s29, 1
      %p136 = por %p134, %p135
      %p137 = scmp.ne.s32.totalorder %s128, %s129
      %p138 = scmp.eq.s32.totalorder %s29, 0
      %p139 = por %p137, %p138
      %p140 = scmp.ne.s32.totalorder %s128, %s129
      %p141 = scmp.eq.s32.totalorder %s30, 1
      %p142 = por %p140, %p141
      %p144 = scmp.ne.s32.totalorder %s129, %s143
      %p145 = scmp.eq.s32.totalorder %s30, 0
      %p146 = por %p144, %p145
      %s148 = sadd.s32 %s147, 1
      %p151 = scmp.eq.s32.totalorder %s24, 1
      %p152 = scmp.ne.s32.totalorder %s147, %s149
      %p153 = scmp.eq.s32.totalorder %s24, 0
      %p154 = por %p152, %p153
      %p155 = scmp.ne.s32.totalorder %s147, %s149
      %p156 = scmp.eq.s32.totalorder %s29, 1
      %p157 = por %p155, %p156
      %p158 = scmp.ne.s32.totalorder %s149, %s150
      %p159 = scmp.eq.s32.totalorder %s29, 0
      %p160 = por %p158, %p159
      %p161 = scmp.ne.s32.totalorder %s149, %s150
      %p162 = scmp.eq.s32.totalorder %s30, 1
      %p163 = por %p161, %p162
      %p165 = scmp.ne.s32.totalorder %s150, %s164
      %p166 = scmp.eq.s32.totalorder %s30, 0
      %p167 = por %p165, %p166
      %s169 = sadd.s32 %s168, 1
      %p172 = scmp.eq.s32.totalorder %s24, 1
      %p173 = scmp.ne.s32.totalorder %s168, %s170
      %p174 = scmp.eq.s32.totalorder %s24, 0
      %p175 = por %p173, %p174
      %p176 = scmp.ne.s32.totalorder %s168, %s170
      %p177 = scmp.eq.s32.totalorder %s29, 1
      %p178 = por %p176, %p177
      %p179 = scmp.ne.s32.totalorder %s170, %s171
      %p180 = scmp.eq.s32.totalorder %s29, 0
      %p181 = por %p179, %p180
      %p182 = scmp.ne.s32.totalorder %s170, %s171
      %p183 = scmp.eq.s32.totalorder %s30, 1
      %p184 = por %p182, %p183
      %p186 = scmp.ne.s32.totalorder %s171, %s185
      %p187 = scmp.eq.s32.totalorder %s30, 0
      %p188 = por %p186, %p187
      %s189 = ssub.s32 %s24, %s31
      %p190 = scmp.eq.s32.totalorder %s189, 0
      %s192 = sadd.s32 %s191, 1
      %s193 = scalar_select %p190, %s191, %s192
      %p196 = pneg %p190
      %p197 = scmp.eq.s32.totalorder %s24, 1
      %p198 = por %p196, %p197
      %p199 = scmp.ne.s32.totalorder %s191, %s194
      %p200 = scmp.eq.s32.totalorder %s24, 0
      %p201 = por %p199, %p200
      %p202 = scmp.ne.s32.totalorder %s191, %s194
      %p203 = scmp.eq.s32.totalorder %s29, 1
      %p204 = por %p202, %p203
      %p205 = scmp.ne.s32.totalorder %s194, %s195
      %p206 = scmp.eq.s32.totalorder %s29, 0
      %p207 = por %p205, %p206
      %p208 = scmp.ne.s32.totalorder %s194, %s195
      %p209 = scmp.eq.s32.totalorder %s30, 1
      %p210 = por %p208, %p209
      %p212 = scmp.ne.s32.totalorder %s195, %s211
      %p213 = scmp.eq.s32.totalorder %s30, 0
      %p214 = por %p212, %p213
      %p215 = scmp.le.s32.totalorder 1, %s24
      %p216 = scmp.lt.s32.totalorder %s24, 3
      %p217 = pnand %p215, %p216
      %p218 = pneg %p217
      // Predicated region
      $region9: #{tpu_custom_call.1} parent=5 // pred_check
        _
      $region10: #{tpu_custom_call.1} parent=5 // pred_check_branch
        %220 = sbr.rel (%p217) target = $region12
      $region11: #{tpu_custom_call.1} parent=5 // pred_region
        %s221 = ssub.s32 %s24, 1
        // Predicated region
        $region13: #{tpu_custom_call.1} parent=11 // pred_check
          %p222 = pneg %p97
        $region14: #{tpu_custom_call.1} parent=11 // pred_check_branch
          %224 = sbr.rel (%p222) target = $region16
        $region15: #{tpu_custom_call.1} parent=11 // pred_region
          %s226 = ssub.s32 2048, 2048
          %227 = vsyncadd [#allocation7], %s226
          %s228 = sshll.u32 [#allocation8], 4
          %s229 = int_to_ptr.vmem [resolvable:$true] %s228
          %234 = dma.hbm_to_vmem [thread:$0]  %s2, 2048, %s229, [#allocation7], 128, 128, 8
        $region16: #{tpu_custom_call.1} parent=11 // pred_fallthru
          _
        // Predicated region
        $region17: #{tpu_custom_call.1} parent=11 // pred_check
          %p235 = pneg %p118
        $region18: #{tpu_custom_call.1} parent=11 // pred_check_branch
          %237 = sbr.rel (%p235) target = $region20
        $region19: #{tpu_custom_call.1} parent=11 // pred_region
          _
        $region20: #{tpu_custom_call.1} parent=11 // pred_fallthru
          _
        // Predicated region
        $region21: #{tpu_custom_call.1} parent=11 // pred_check
          %p238 = pneg %p139
        $region22: #{tpu_custom_call.1} parent=11 // pred_check_branch
          %240 = sbr.rel (%p238) target = $region24
        $region23: #{tpu_custom_call.1} parent=11 // pred_region
          %s242 = ssub.s32 2048, 2048
          %243 = vsyncadd [#allocation10], %s242
          %s244 = sshll.u32 [#allocation9], 4
          %s245 = int_to_ptr.vmem [resolvable:$true] %s244
          %250 = dma.hbm_to_vmem [thread:$0]  %s4, 2048, %s245, [#allocation10], 128, 128, 8
        $region24: #{tpu_custom_call.1} parent=11 // pred_fallthru
          _
        // Predicated region
        $region25: #{tpu_custom_call.1} parent=11 // pred_check
          %p251 = pneg %p160
        $region26: #{tpu_custom_call.1} parent=11 // pred_check_branch
          %253 = sbr.rel (%p251) target = $region28
        $region27: #{tpu_custom_call.1} parent=11 // pred_region
          _
        $region28: #{tpu_custom_call.1} parent=11 // pred_fallthru
          _
        // Predicated region
        $region29: #{tpu_custom_call.1} parent=11 // pred_check
          %p254 = pneg %p181
        $region30: #{tpu_custom_call.1} parent=11 // pred_check_branch
          %256 = sbr.rel (%p254) target = $region32
        $region31: #{tpu_custom_call.1} parent=11 // pred_region
          _
        $region32: #{tpu_custom_call.1} parent=11 // pred_fallthru
          _
      $region12: #{tpu_custom_call.1} parent=5 // pred_fallthru
        _
      %p257 = scmp.lt.s32.totalorder %s24, 2
      // Predicated region
      $region33: #{tpu_custom_call.1} parent=5 // pred_check
        %p258 = pneg %p257
      $region34: #{tpu_custom_call.1} parent=5 // pred_check_branch
        %260 = sbr.rel (%p258) target = $region36
      $region35: #{tpu_custom_call.1} parent=5 // pred_region
        // Predicated region
        $region37: #{tpu_custom_call.1} parent=35 // pred_check
          %p261 = pneg %p44
        $region38: #{tpu_custom_call.1} parent=35 // pred_check_branch
          %263 = sbr.rel (%p261) target = $region40
        $region39: #{tpu_custom_call.1} parent=35 // pred_region
          %s264 = sand.u32 %s34, 1
          %s265 = scalar_lea.sflag [#allocation4], %s264
          %s266 = sand.u32 %s34, 1
          %s267 = smul.addr %s266, 128
          %s268 = scalar_lea.vmem [#allocation3], %s267
          %s270 = ssub.s32 2048, 2048
          %271 = vsyncadd %s265, %s270
          %s272 = smul.addr %s24, 16
          %s273 = smul.addr %s272, 128
          %s274 = scalar_lea.hbm %s0, %s273
          %s275 = sshll.u32 %s268, 4
          %s276 = int_to_ptr.vmem [resolvable:$true] %s275
          %281 = dma.hbm_to_vmem [thread:$0]  %s274, 2048, %s276, %s265, 128, 128, 8
        $region40: #{tpu_custom_call.1} parent=35 // pred_fallthru
          _
        // Predicated region
        $region41: #{tpu_custom_call.1} parent=35 // pred_check
          %p282 = pneg %p70
        $region42: #{tpu_custom_call.1} parent=35 // pred_check_branch
          %284 = sbr.rel (%p282) target = $region44
        $region43: #{tpu_custom_call.1} parent=35 // pred_region
          %s285 = sand.u32 %s24, 1
          %s286 = scalar_lea.sflag [#allocation7], %s285
          %s287 = sand.u32 %s60, 1
          %s288 = smul.addr %s287, 8
          %s289 = scalar_lea.vmem [#allocation6], %s288
          %s291 = ssub.s32 128, 128
          %292 = vsyncadd %s286, %s291
          %s293 = smul.addr %s24, 128
          %s294 = scalar_lea.hbm %s1, %s293
          %s296 = sshll.u32 %s289, 4
          %s297 = int_to_ptr.vmem [resolvable:$true] %s296
          %299 = dma.hbm_to_vmem [thread:$0]  %s294, 128, %s297, %s286
        $region44: #{tpu_custom_call.1} parent=35 // pred_fallthru
          _
      $region36: #{tpu_custom_call.1} parent=5 // pred_fallthru
        _
      %p300 = scmp.le.s32.totalorder 1, %s24
      %p301 = scmp.lt.s32.totalorder %s24, 3
      %p302 = pnand %p300, %p301
      %p303 = pneg %p302
      // Predicated region
      $region45: #{tpu_custom_call.1} parent=5 // pred_check
        _
      $region46: #{tpu_custom_call.1} parent=5 // pred_check_branch
        %305 = sbr.rel (%p302) target = $region48
      $region47: #{tpu_custom_call.1} parent=5 // pred_region
        %s306 = ssub.s32 %s24, 1
        %s307 = sand.u32 %s37, 1
        %s308 = scalar_lea.sflag [#allocation4], %s307
        %s309 = sand.u32 %s37, 1
        %s310 = smul.addr %s309, 128
        %s311 = scalar_lea.vmem [#allocation3], %s310
        // Predicated region
        $region49: #{tpu_custom_call.1} parent=47 // pred_check
          %p312 = pneg %p50
        $region50: #{tpu_custom_call.1} parent=47 // pred_check_branch
          %314 = sbr.rel (%p312) target = $region52
        $region51: #{tpu_custom_call.1} parent=47 // pred_region
          %315 = dma.done %s308, 2048
        $region52: #{tpu_custom_call.1} parent=47 // pred_fallthru
          _
        %s316 = sand.u32 %s29, 1
        %s317 = scalar_lea.sflag [#allocation7], %s316
        %s318 = sand.u32 %s63, 1
        %s319 = smul.addr %s318, 8
        %s320 = scalar_lea.vmem [#allocation6], %s319
        // Predicated region
        $region53: #{tpu_custom_call.1} parent=47 // pred_check
          %p321 = pneg %p76
        $region54: #{tpu_custom_call.1} parent=47 // pred_check_branch
          %323 = sbr.rel (%p321) target = $region56
        $region55: #{tpu_custom_call.1} parent=47 // pred_region
          %324 = dma.done %s317, 128
        $region56: #{tpu_custom_call.1} parent=47 // pred_fallthru
          _
        // Predicated region
        $region57: #{tpu_custom_call.1} parent=47 // pred_check
          %p325 = pneg %p97
        $region58: #{tpu_custom_call.1} parent=47 // pred_check_branch
          %327 = sbr.rel (%p325) target = $region60
        $region59: #{tpu_custom_call.1} parent=47 // pred_region
          %328 = dma.done [#allocation7], 2048
        $region60: #{tpu_custom_call.1} parent=47 // pred_fallthru
          _
        // Predicated region
        $region61: #{tpu_custom_call.1} parent=47 // pred_check
          %p329 = pneg %p139
        $region62: #{tpu_custom_call.1} parent=47 // pred_check_branch
          %331 = sbr.rel (%p329) target = $region64
        $region63: #{tpu_custom_call.1} parent=47 // pred_region
          %332 = dma.done [#allocation10], 2048
        $region64: #{tpu_custom_call.1} parent=47 // pred_fallthru
          _
        %s333 = sand.u32 %s37, 1
        %s334 = scalar_lea.sflag [#allocation4], %s333
        %s335 = sand.u32 %s37, 1
        %s336 = smul.addr %s335, 128
        %s337 = scalar_lea.vmem [#allocation3], %s336
        %p338 = pneg %p50
        %p339 = pneg %p47
        %s340 = sand.u32 %s29, 1
        %s341 = scalar_lea.sflag [#allocation7], %s340
        %s342 = sand.u32 %s63, 1
        %s343 = smul.addr %s342, 8
        %s344 = scalar_lea.vmem [#allocation6], %s343
        %p345 = pneg %p76
        %p346 = pneg %p73
        %p347 = pneg %p97
        %p348 = pneg %p94
        %p349 = pneg %p118
        %p350 = pneg %p115
        %p351 = pneg %p139
        %p352 = pneg %p136
        %p353 = pneg %p160
        %p354 = pneg %p157
        %p355 = pneg %p181
        %p356 = pneg %p178
        %p357 = pneg %p207
        %p358 = pneg %p204
        %s359 = sand.u32 %s194, 1
        %s360 = scalar_lea.sflag [#allocation5], %s359
        %s361 = sand.u32 %s194, 1
        %s362 = smul.addr %s361, 8
        %s363 = scalar_lea.vmem [#allocation11], %s362
        %v364 = vld [vmem:[%s311] sm:$0xff]
        %v365 = vld [vmem:[%s311 + $0x8] sm:$0xff]
        %v366 = vld [vmem:[%s311 + $0x10] sm:$0xff]
        %v367 = vld [vmem:[%s311 + $0x18] sm:$0xff]
        %v368 = vld [vmem:[%s311 + $0x20] sm:$0xff]
        %v369 = vld [vmem:[%s311 + $0x28] sm:$0xff]
        %v370 = vld [vmem:[%s311 + $0x30] sm:$0xff]
        %v371 = vld [vmem:[%s311 + $0x38] sm:$0xff]
        %v372 = vld [vmem:[%s311 + $0x40] sm:$0xff]
        %v373 = vld [vmem:[%s311 + $0x48] sm:$0xff]
        %v374 = vld [vmem:[%s311 + $0x50] sm:$0xff]
        %v375 = vld [vmem:[%s311 + $0x58] sm:$0xff]
        %v376 = vld [vmem:[%s311 + $0x60] sm:$0xff]
        %v377 = vld [vmem:[%s311 + $0x68] sm:$0xff]
        %v378 = vld [vmem:[%s311 + $0x70] sm:$0xff]
        %v379 = vld [vmem:[%s311 + $0x78] sm:$0xff]
        %v380 = vld [vmem:[%s320] sm:$0xff]
        %381 = vadd.xlane.f32.xlu0 %v364
        %v382 = vpop.xlane.xlu0 %381
        %383 = vadd.xlane.f32.xlu0 %v365
        %v384 = vpop.xlane.xlu0 %383
        %385 = vadd.xlane.f32.xlu0 %v366
        %v386 = vpop.xlane.xlu0 %385
        %387 = vadd.xlane.f32.xlu0 %v367
        %v388 = vpop.xlane.xlu0 %387
        %389 = vadd.xlane.f32.xlu0 %v368
        %v390 = vpop.xlane.xlu0 %389
        %391 = vadd.xlane.f32.xlu0 %v369
        %v392 = vpop.xlane.xlu0 %391
        %393 = vadd.xlane.f32.xlu0 %v370
        %v394 = vpop.xlane.xlu0 %393
        %395 = vadd.xlane.f32.xlu0 %v371
        %v396 = vpop.xlane.xlu0 %395
        %397 = vadd.xlane.f32.xlu0 %v372
        %v398 = vpop.xlane.xlu0 %397
        %399 = vadd.xlane.f32.xlu0 %v373
        %v400 = vpop.xlane.xlu0 %399
        %401 = vadd.xlane.f32.xlu0 %v374
        %v402 = vpop.xlane.xlu0 %401
        %403 = vadd.xlane.f32.xlu0 %v375
        %v404 = vpop.xlane.xlu0 %403
        %405 = vadd.xlane.f32.xlu0 %v376
        %v406 = vpop.xlane.xlu0 %405
        %407 = vadd.xlane.f32.xlu0 %v377
        %v408 = vpop.xlane.xlu0 %407
        %409 = vadd.xlane.f32.xlu0 %v378
        %v410 = vpop.xlane.xlu0 %409
        %411 = vadd.xlane.f32.xlu0 %v379
        %v412 = vpop.xlane.xlu0 %411
        %v413 = vmul.f32 %v382, 0.015625
        %v414 = vmul.f32 %v384, 0.015625
        %v415 = vmul.f32 %v386, 0.015625
        %v416 = vmul.f32 %v388, 0.015625
        %v417 = vmul.f32 %v390, 0.015625
        %v418 = vmul.f32 %v392, 0.015625
        %v419 = vmul.f32 %v394, 0.015625
        %v420 = vmul.f32 %v396, 0.015625
        %v421 = vmul.f32 %v398, 0.015625
        %v422 = vmul.f32 %v400, 0.015625
        %v423 = vmul.f32 %v402, 0.015625
        %v424 = vmul.f32 %v404, 0.015625
        %v425 = vmul.f32 %v406, 0.015625
        %v426 = vmul.f32 %v408, 0.015625
        %v427 = vmul.f32 %v410, 0.015625
        %v428 = vmul.f32 %v412, 0.015625
        %v429 = vmul.f32 %v364, %v364
        %v430 = vmul.f32 %v365, %v365
        %v431 = vmul.f32 %v366, %v366
        %v432 = vmul.f32 %v367, %v367
        %v433 = vmul.f32 %v368, %v368
        %v434 = vmul.f32 %v369, %v369
        %v435 = vmul.f32 %v370, %v370
        %v436 = vmul.f32 %v371, %v371
        %v437 = vmul.f32 %v372, %v372
        %v438 = vmul.f32 %v373, %v373
        %v439 = vmul.f32 %v374, %v374
        %v440 = vmul.f32 %v375, %v375
        %v441 = vmul.f32 %v376, %v376
        %v442 = vmul.f32 %v377, %v377
        %v443 = vmul.f32 %v378, %v378
        %v444 = vmul.f32 %v379, %v379
        %445 = vadd.xlane.f32.xlu0 %v429
        %v446 = vpop.xlane.xlu0 %445
        %447 = vadd.xlane.f32.xlu0 %v430
        %v448 = vpop.xlane.xlu0 %447
        %449 = vadd.xlane.f32.xlu0 %v431
        %v450 = vpop.xlane.xlu0 %449
        %451 = vadd.xlane.f32.xlu0 %v432
        %v452 = vpop.xlane.xlu0 %451
        %453 = vadd.xlane.f32.xlu0 %v433
        %v454 = vpop.xlane.xlu0 %453
        %455 = vadd.xlane.f32.xlu0 %v434
        %v456 = vpop.xlane.xlu0 %455
        %457 = vadd.xlane.f32.xlu0 %v435
        %v458 = vpop.xlane.xlu0 %457
        %459 = vadd.xlane.f32.xlu0 %v436
        %v460 = vpop.xlane.xlu0 %459
        %461 = vadd.xlane.f32.xlu0 %v437
        %v462 = vpop.xlane.xlu0 %461
        %463 = vadd.xlane.f32.xlu0 %v438
        %v464 = vpop.xlane.xlu0 %463
        %465 = vadd.xlane.f32.xlu0 %v439
        %v466 = vpop.xlane.xlu0 %465
        %467 = vadd.xlane.f32.xlu0 %v440
        %v468 = vpop.xlane.xlu0 %467
        %469 = vadd.xlane.f32.xlu0 %v441
        %v470 = vpop.xlane.xlu0 %469
        %471 = vadd.xlane.f32.xlu0 %v442
        %v472 = vpop.xlane.xlu0 %471
        %473 = vadd.xlane.f32.xlu0 %v443
        %v474 = vpop.xlane.xlu0 %473
        %475 = vadd.xlane.f32.xlu0 %v444
        %v476 = vpop.xlane.xlu0 %475
        %v477 = vmul.f32 %v446, 0.015625
        %v478 = vmul.f32 %v448, 0.015625
        %v479 = vmul.f32 %v450, 0.015625
        %v480 = vmul.f32 %v452, 0.015625
        %v481 = vmul.f32 %v454, 0.015625
        %v482 = vmul.f32 %v456, 0.015625
        %v483 = vmul.f32 %v458, 0.015625
        %v484 = vmul.f32 %v460, 0.015625
        %v485 = vmul.f32 %v462, 0.015625
        %v486 = vmul.f32 %v464, 0.015625
        %v487 = vmul.f32 %v466, 0.015625
        %v488 = vmul.f32 %v468, 0.015625
        %v489 = vmul.f32 %v470, 0.015625
        %v490 = vmul.f32 %v472, 0.015625
        %v491 = vmul.f32 %v474, 0.015625
        %v492 = vmul.f32 %v476, 0.015625
        %v493 = vmul.f32 %v413, %v413
        %v494 = vmul.f32 %v414, %v414
        %v495 = vmul.f32 %v415, %v415
        %v496 = vmul.f32 %v416, %v416
        %v497 = vmul.f32 %v417, %v417
        %v498 = vmul.f32 %v418, %v418
        %v499 = vmul.f32 %v419, %v419
        %v500 = vmul.f32 %v420, %v420
        %v501 = vmul.f32 %v421, %v421
        %v502 = vmul.f32 %v422, %v422
        %v503 = vmul.f32 %v423, %v423
        %v504 = vmul.f32 %v424, %v424
        %v505 = vmul.f32 %v425, %v425
        %v506 = vmul.f32 %v426, %v426
        %v507 = vmul.f32 %v427, %v427
        %v508 = vmul.f32 %v428, %v428
        %v509 = vsub.f32 %v477, %v493
        %v510 = vsub.f32 %v478, %v494
        %v511 = vsub.f32 %v479, %v495
        %v512 = vsub.f32 %v480, %v496
        %v513 = vsub.f32 %v481, %v497
        %v514 = vsub.f32 %v482, %v498
        %v515 = vsub.f32 %v483, %v499
        %v516 = vsub.f32 %v484, %v500
        %v517 = vsub.f32 %v485, %v501
        %v518 = vsub.f32 %v486, %v502
        %v519 = vsub.f32 %v487, %v503
        %v520 = vsub.f32 %v488, %v504
        %v521 = vsub.f32 %v489, %v505
        %v522 = vsub.f32 %v490, %v506
        %v523 = vsub.f32 %v491, %v507
        %v524 = vsub.f32 %v492, %v508
        %v525 = vsub.f32 %v364, %v413
        %v526 = vsub.f32 %v365, %v414
        %v527 = vsub.f32 %v366, %v415
        %v528 = vsub.f32 %v367, %v416
        %v529 = vsub.f32 %v368, %v417
        %v530 = vsub.f32 %v369, %v418
        %v531 = vsub.f32 %v370, %v419
        %v532 = vsub.f32 %v371, %v420
        %v533 = vsub.f32 %v372, %v421
        %v534 = vsub.f32 %v373, %v422
        %v535 = vsub.f32 %v374, %v423
        %v536 = vsub.f32 %v375, %v424
        %v537 = vsub.f32 %v376, %v425
        %v538 = vsub.f32 %v377, %v426
        %v539 = vsub.f32 %v378, %v427
        %v540 = vsub.f32 %v379, %v428
        %v541 = vadd.f32 %v509, 1e-05
        %v542 = vadd.f32 %v510, 1e-05
        %v543 = vadd.f32 %v511, 1e-05
        %v544 = vadd.f32 %v512, 1e-05
        %v545 = vadd.f32 %v513, 1e-05
        %v546 = vadd.f32 %v514, 1e-05
        %v547 = vadd.f32 %v515, 1e-05
        %v548 = vadd.f32 %v516, 1e-05
        %v549 = vadd.f32 %v517, 1e-05
        %v550 = vadd.f32 %v518, 1e-05
        %v551 = vadd.f32 %v519, 1e-05
        %v552 = vadd.f32 %v520, 1e-05
        %v553 = vadd.f32 %v521, 1e-05
        %v554 = vadd.f32 %v522, 1e-05
        %v555 = vadd.f32 %v523, 1e-05
        %v556 = vadd.f32 %v524, 1e-05
        %v557 = vrsqrt.pop %v541
        %v558 = vrsqrt.pop %v542
        %v559 = vrsqrt.pop %v543
        %v560 = vrsqrt.pop %v544
        %v561 = vrsqrt.pop %v545
        %v562 = vrsqrt.pop %v546
        %v563 = vrsqrt.pop %v547
        %v564 = vrsqrt.pop %v548
        %v565 = vrsqrt.pop %v549
        %v566 = vrsqrt.pop %v550
        %v567 = vrsqrt.pop %v551
        %v568 = vrsqrt.pop %v552
        %v569 = vrsqrt.pop %v553
        %v570 = vrsqrt.pop %v554
        %v571 = vrsqrt.pop %v555
        %v572 = vrsqrt.pop %v556
        %v573 = vmul.f32 %v525, %v557
        %v574 = vmul.f32 %v526, %v558
        %v575 = vmul.f32 %v527, %v559
        %v576 = vmul.f32 %v528, %v560
        %v577 = vmul.f32 %v529, %v561
        %v578 = vmul.f32 %v530, %v562
        %v579 = vmul.f32 %v531, %v563
        %v580 = vmul.f32 %v532, %v564
        %v581 = vmul.f32 %v533, %v565
        %v582 = vmul.f32 %v534, %v566
        %v583 = vmul.f32 %v535, %v567
        %v584 = vmul.f32 %v536, %v568
        %v585 = vmul.f32 %v537, %v569
        %v586 = vmul.f32 %v538, %v570
        %v587 = vmul.f32 %v539, %v571
        %v588 = vmul.f32 %v540, %v572
        %589 = vadd.xlane.f32.xlu0 %v380
        %v590 = vpop.xlane.xlu0 %589
        %v591 = vmul.f32 %v590, 0.03125
        %v592 = vmul.f32 %v380, %v380
        %593 = vadd.xlane.f32.xlu0 %v592
        %v594 = vpop.xlane.xlu0 %593
        %v595 = vmul.f32 %v594, 0.03125
        %v596 = vmul.f32 %v591, %v591
        %v597 = vsub.f32 %v595, %v596
        %v598 = vsub.f32 %v380, %v591
        %v599 = vadd.f32 %v597, 1e-05
        %v600 = vrsqrt.pop %v599
        %v601 = vmul.f32 %v598, %v600
        %v602 = vld [vmem:[#allocation8] sm:$0xff]
        %v603 = vld [vmem:[#allocation8 + $0x8] sm:$0xff]
        %v604 = vld [vmem:[#allocation8 + $0x10] sm:$0xff]
        %v605 = vld [vmem:[#allocation8 + $0x18] sm:$0xff]
        %v606 = vld [vmem:[#allocation8 + $0x20] sm:$0xff]
        %v607 = vld [vmem:[#allocation8 + $0x28] sm:$0xff]
        %v608 = vld [vmem:[#allocation8 + $0x30] sm:$0xff]
        %v609 = vld [vmem:[#allocation8 + $0x38] sm:$0xff]
        %v610 = vld [vmem:[#allocation8 + $0x40] sm:$0xff]
        %v611 = vld [vmem:[#allocation8 + $0x48] sm:$0xff]
        %v612 = vld [vmem:[#allocation8 + $0x50] sm:$0xff]
        %v613 = vld [vmem:[#allocation8 + $0x58] sm:$0xff]
        %v614 = vld [vmem:[#allocation8 + $0x60] sm:$0xff]
        %v615 = vld [vmem:[#allocation8 + $0x68] sm:$0xff]
        %v616 = vld [vmem:[#allocation8 + $0x70] sm:$0xff]
        %v617 = vld [vmem:[#allocation8 + $0x78] sm:$0xff]
        %v618 = vld [vmem:[%s3] sm:$0x1]
        %v620 = vlaneseq
        %v621 = vshrl.u32 %v620, 7
        %v622 = vsub.s32 0, %v621
        %v623 = vrot.slane %v618, %v622
        %625 = vmatprep.subr.mxu0 0.0
        %626 = vmatpush1.msra.mxu0 %v602
        %627 = vmatprep.subr.mxu0 0.0
        %628 = vmatpush1.msra.mxu0 %v603
        %629 = vmatprep.subr.mxu0 0.0
        %630 = vmatpush1.msra.mxu0 %v604
        %631 = vmatprep.subr.mxu0 0.0
        %632 = vmatpush1.msra.mxu0 %v605
        %633 = vmatprep.subr.mxu0 0.0
        %634 = vmatpush1.msra.mxu0 %v606
        %635 = vmatprep.subr.mxu0 0.0
        %636 = vmatpush1.msra.mxu0 %v607
        %637 = vmatprep.subr.mxu0 0.0
        %638 = vmatpush1.msra.mxu0 %v608
        %639 = vmatprep.subr.mxu0 0.0
        %640 = vmatpush1.msra.mxu0 %v609
        %641 = vmatprep.subr.mxu0 0.0
        %642 = vmatpush1.msra.mxu0 %v610
        %643 = vmatprep.subr.mxu0 0.0
        %644 = vmatpush1.msra.mxu0 %v611
        %645 = vmatprep.subr.mxu0 0.0
        %646 = vmatpush1.msra.mxu0 %v612
        %647 = vmatprep.subr.mxu0 0.0
        %648 = vmatpush1.msra.mxu0 %v613
        %649 = vmatprep.subr.mxu0 0.0
        %650 = vmatpush1.msra.mxu0 %v614
        %651 = vmatprep.subr.mxu0 0.0
        %652 = vmatpush1.msra.mxu0 %v615
        %653 = vmatprep.subr.mxu0 0.0
        %654 = vmatpush1.msra.mxu0 %v616
        %655 = vmatprep.subr.mxu0 0.0
        %656 = vmatpush1.msra.mxu0 %v617
        %657 = vmatprep.subr.mxu0 0.0
        %658 = vmatpush1.msra.mxu0 0.0
        %659 = vmatprep.subr.mxu0 0.0
        %660 = vmatpush1.msra.mxu0 0.0
        %661 = vmatprep.subr.mxu0 0.0
        %662 = vmatpush1.msra.mxu0 0.0
        %663 = vmatprep.subr.mxu0 0.0
        %664 = vmatpush1.msra.mxu0 0.0
        %665 = vmatprep.subr.mxu0 0.0
        %666 = vmatpush1.msra.mxu0 0.0
        %667 = vmatprep.subr.mxu0 0.0
        %668 = vmatpush1.msra.mxu0 0.0
        %669 = vmatprep.subr.mxu0 0.0
        %670 = vmatpush1.msra.mxu0 0.0
        %671 = vmatprep.subr.mxu0 0.0
        %672 = vmatpush1.msra.mxu0 0.0
        %673 = vmatprep.subr.mxu0 0.0
        %674 = vmatpush1.msra.mxu0 0.0
        %675 = vmatprep.subr.mxu0 0.0
        %676 = vmatpush1.msra.mxu0 0.0
        %677 = vmatprep.subr.mxu0 0.0
        %678 = vmatpush1.msra.mxu0 0.0
        %679 = vmatprep.subr.mxu0 0.0
        %680 = vmatpush1.msra.mxu0 0.0
        %681 = vmatprep.subr.mxu0 0.0
        %682 = vmatpush1.msra.mxu0 0.0
        %683 = vmatprep.subr.mxu0 0.0
        %684 = vmatpush1.msra.mxu0 0.0
        %685 = vmatprep.subr.mxu0 0.0
        %686 = vmatpush1.msra.mxu0 0.0
        %687 = vmatprep.subr.mxu0 0.0
        %688 = vmatpush1.msra.mxu0 0.0
        %689 = vmatprep.mubr.f32.mxu0 0.0
        %690 = vmatmul.mubr.f32.gmra.mrb[0].mxu0 %v573
        %v691 = vpop.f32.mrb[0].mxu0
        %v692 = vadd.f32 %v623, %v691
        %v693 = vpop.f32.mrb[0].mxu0
        %694 = vmatprep.mubr.f32.mxu0 0.0
        %695 = vmatmul.mubr.f32.gmra.mrb[0].mxu0 %v574
        %v696 = vpop.f32.mrb[0].mxu0
        %v697 = vadd.f32 %v623, %v696
        %v698 = vpop.f32.mrb[0].mxu0
        %699 = vmatprep.mubr.f32.mxu0 0.0
        %700 = vmatmul.mubr.f32.gmra.mrb[0].mxu0 %v575
        %v701 = vpop.f32.mrb[0].mxu0
        %v702 = vadd.f32 %v623, %v701
        %v703 = vpop.f32.mrb[0].mxu0
        %704 = vmatprep.mubr.f32.mxu0 0.0
        %705 = vmatmul.mubr.f32.gmra.mrb[0].mxu0 %v576
        %v706 = vpop.f32.mrb[0].mxu0
        %v707 = vadd.f32 %v623, %v706
        %v708 = vpop.f32.mrb[0].mxu0
        %709 = vmatprep.mubr.f32.mxu0 0.0
        %710 = vmatmul.mubr.f32.gmra.mrb[0].mxu0 %v577
        %v711 = vpop.f32.mrb[0].mxu0
        %v712 = vadd.f32 %v623, %v711
        %v713 = vpop.f32.mrb[0].mxu0
        %714 = vmatprep.mubr.f32.mxu0 0.0
        %715 = vmatmul.mubr.f32.gmra.mrb[0].mxu0 %v578
        %v716 = vpop.f32.mrb[0].mxu0
        %v717 = vadd.f32 %v623, %v716
        %v718 = vpop.f32.mrb[0].mxu0
        %719 = vmatprep.mubr.f32.mxu0 0.0
        %720 = vmatmul.mubr.f32.gmra.mrb[0].mxu0 %v579
        %v721 = vpop.f32.mrb[0].mxu0
        %v722 = vadd.f32 %v623, %v721
        %v723 = vpop.f32.mrb[0].mxu0
        %724 = vmatprep.mubr.f32.mxu0 0.0
        %725 = vmatmul.mubr.f32.gmra.mrb[0].mxu0 %v580
        %v726 = vpop.f32.mrb[0].mxu0
        %v727 = vadd.f32 %v623, %v726
        %v728 = vpop.f32.mrb[0].mxu0
        %729 = vmatprep.mubr.f32.mxu0 0.0
        %730 = vmatmul.mubr.f32.gmra.mrb[0].mxu0 %v581
        %v731 = vpop.f32.mrb[0].mxu0
        %v732 = vadd.f32 %v623, %v731
        %v733 = vpop.f32.mrb[0].mxu0
        %734 = vmatprep.mubr.f32.mxu0 0.0
        %735 = vmatmul.mubr.f32.gmra.mrb[0].mxu0 %v582
        %v736 = vpop.f32.mrb[0].mxu0
        %v737 = vadd.f32 %v623, %v736
        %v738 = vpop.f32.mrb[0].mxu0
        %739 = vmatprep.mubr.f32.mxu0 0.0
        %740 = vmatmul.mubr.f32.gmra.mrb[0].mxu0 %v583
        %v741 = vpop.f32.mrb[0].mxu0
        %v742 = vadd.f32 %v623, %v741
        %v743 = vpop.f32.mrb[0].mxu0
        %744 = vmatprep.mubr.f32.mxu0 0.0
        %745 = vmatmul.mubr.f32.gmra.mrb[0].mxu0 %v584
        %v746 = vpop.f32.mrb[0].mxu0
        %v747 = vadd.f32 %v623, %v746
        %v748 = vpop.f32.mrb[0].mxu0
        %749 = vmatprep.mubr.f32.mxu0 0.0
        %750 = vmatmul.mubr.f32.gmra.mrb[0].mxu0 %v585
        %v751 = vpop.f32.mrb[0].mxu0
        %v752 = vadd.f32 %v623, %v751
        %v753 = vpop.f32.mrb[0].mxu0
        %754 = vmatprep.mubr.f32.mxu0 0.0
        %755 = vmatmul.mubr.f32.gmra.mrb[0].mxu0 %v586
        %v756 = vpop.f32.mrb[0].mxu0
        %v757 = vadd.f32 %v623, %v756
        %v758 = vpop.f32.mrb[0].mxu0
        %759 = vmatprep.mubr.f32.mxu0 0.0
        %760 = vmatmul.mubr.f32.gmra.mrb[0].mxu0 %v587
        %v761 = vpop.f32.mrb[0].mxu0
        %v762 = vadd.f32 %v623, %v761
        %v763 = vpop.f32.mrb[0].mxu0
        %764 = vmatprep.mubr.f32.mxu0 0.0
        %765 = vmatmul.mubr.f32.gmra.mrb[0].mxu0 %v588
        %v766 = vpop.f32.mrb[0].mxu0
        %v767 = vadd.f32 %v623, %v766
        %v768 = vpop.f32.mrb[0].mxu0
        %769 = vdwg.mxu0
        %v770 = vld [vmem:[#allocation9] sm:$0xff]
        %v771 = vld [vmem:[#allocation9 + $0x8] sm:$0xff]
        %v772 = vld [vmem:[#allocation9 + $0x10] sm:$0xff]
        %v773 = vld [vmem:[#allocation9 + $0x18] sm:$0xff]
        %v774 = vld [vmem:[#allocation9 + $0x20] sm:$0xff]
        %v775 = vld [vmem:[#allocation9 + $0x28] sm:$0xff]
        %v776 = vld [vmem:[#allocation9 + $0x30] sm:$0xff]
        %v777 = vld [vmem:[#allocation9 + $0x38] sm:$0xff]
        %v778 = vld [vmem:[#allocation9 + $0x40] sm:$0xff]
        %v779 = vld [vmem:[#allocation9 + $0x48] sm:$0xff]
        %v780 = vld [vmem:[#allocation9 + $0x50] sm:$0xff]
        %v781 = vld [vmem:[#allocation9 + $0x58] sm:$0xff]
        %v782 = vld [vmem:[#allocation9 + $0x60] sm:$0xff]
        %v783 = vld [vmem:[#allocation9 + $0x68] sm:$0xff]
        %v784 = vld [vmem:[#allocation9 + $0x70] sm:$0xff]
        %v785 = vld [vmem:[#allocation9 + $0x78] sm:$0xff]
        %v786 = vld [vmem:[%s5] sm:$0x1]
        %v788 = vlaneseq
        %v789 = vshrl.u32 %v788, 7
        %v790 = vsub.s32 0, %v789
        %v791 = vrot.slane %v786, %v790
        %793 = vmatprep.subr.mxu0 0.0
        %794 = vmatpush1.msra.mxu0 %v770
        %795 = vmatprep.subr.mxu0 0.0
        %796 = vmatpush1.msra.mxu0 %v771
        %797 = vmatprep.subr.mxu0 0.0
        %798 = vmatpush1.msra.mxu0 %v772
        %799 = vmatprep.subr.mxu0 0.0
        %800 = vmatpush1.msra.mxu0 %v773
        %801 = vmatprep.subr.mxu0 0.0
        %802 = vmatpush1.msra.mxu0 %v774
        %803 = vmatprep.subr.mxu0 0.0
        %804 = vmatpush1.msra.mxu0 %v775
        %805 = vmatprep.subr.mxu0 0.0
        %806 = vmatpush1.msra.mxu0 %v776
        %807 = vmatprep.subr.mxu0 0.0
        %808 = vmatpush1.msra.mxu0 %v777
        %809 = vmatprep.subr.mxu0 0.0
        %810 = vmatpush1.msra.mxu0 %v778
        %811 = vmatprep.subr.mxu0 0.0
        %812 = vmatpush1.msra.mxu0 %v779
        %813 = vmatprep.subr.mxu0 0.0
        %814 = vmatpush1.msra.mxu0 %v780
        %815 = vmatprep.subr.mxu0 0.0
        %816 = vmatpush1.msra.mxu0 %v781
        %817 = vmatprep.subr.mxu0 0.0
        %818 = vmatpush1.msra.mxu0 %v782
        %819 = vmatprep.subr.mxu0 0.0
        %820 = vmatpush1.msra.mxu0 %v783
        %821 = vmatprep.subr.mxu0 0.0
        %822 = vmatpush1.msra.mxu0 %v784
        %823 = vmatprep.subr.mxu0 0.0
        %824 = vmatpush1.msra.mxu0 %v785
        %825 = vmatprep.subr.mxu0 0.0
        %826 = vmatpush1.msra.mxu0 0.0
        %827 = vmatprep.subr.mxu0 0.0
        %828 = vmatpush1.msra.mxu0 0.0
        %829 = vmatprep.subr.mxu0 0.0
        %830 = vmatpush1.msra.mxu0 0.0
        %831 = vmatprep.subr.mxu0 0.0
        %832 = vmatpush1.msra.mxu0 0.0
        %833 = vmatprep.subr.mxu0 0.0
        %834 = vmatpush1.msra.mxu0 0.0
        %835 = vmatprep.subr.mxu0 0.0
        %836 = vmatpush1.msra.mxu0 0.0
        %837 = vmatprep.subr.mxu0 0.0
        %838 = vmatpush1.msra.mxu0 0.0
        %839 = vmatprep.subr.mxu0 0.0
        %840 = vmatpush1.msra.mxu0 0.0
        %841 = vmatprep.subr.mxu0 0.0
        %842 = vmatpush1.msra.mxu0 0.0
        %843 = vmatprep.subr.mxu0 0.0
        %844 = vmatpush1.msra.mxu0 0.0
        %845 = vmatprep.subr.mxu0 0.0
        %846 = vmatpush1.msra.mxu0 0.0
        %847 = vmatprep.subr.mxu0 0.0
        %848 = vmatpush1.msra.mxu0 0.0
        %849 = vmatprep.subr.mxu0 0.0
        %850 = vmatpush1.msra.mxu0 0.0
        %851 = vmatprep.subr.mxu0 0.0
        %852 = vmatpush1.msra.mxu0 0.0
        %853 = vmatprep.subr.mxu0 0.0
        %854 = vmatpush1.msra.mxu0 0.0
        %855 = vmatprep.subr.mxu0 0.0
        %856 = vmatpush1.msra.mxu0 0.0
        %857 = vmatprep.mubr.f32.mxu0 0.0
        %858 = vmatmul.mubr.f32.gmra.mrb[0].mxu0 %v601
        %v859 = vpop.f32.mrb[0].mxu0
        %v860 = vadd.f32 %v791, %v859
        %v861 = vpop.f32.mrb[0].mxu0
        %862 = vdwg.mxu0
        %v863 = vmul.f32 %v692, %v692
        %v864 = vmul.f32 %v697, %v697
        %v865 = vmul.f32 %v702, %v702
        %v866 = vmul.f32 %v707, %v707
        %v867 = vmul.f32 %v712, %v712
        %v868 = vmul.f32 %v717, %v717
        %v869 = vmul.f32 %v722, %v722
        %v870 = vmul.f32 %v727, %v727
        %v871 = vmul.f32 %v732, %v732
        %v872 = vmul.f32 %v737, %v737
        %v873 = vmul.f32 %v742, %v742
        %v874 = vmul.f32 %v747, %v747
        %v875 = vmul.f32 %v752, %v752
        %v876 = vmul.f32 %v757, %v757
        %v877 = vmul.f32 %v762, %v762
        %v878 = vmul.f32 %v767, %v767
        %879 = vadd.xlane.f32.xlu0 %v863
        %v880 = vpop.xlane.xlu0 %879
        %881 = vadd.xlane.f32.xlu0 %v864
        %v882 = vpop.xlane.xlu0 %881
        %883 = vadd.xlane.f32.xlu0 %v865
        %v884 = vpop.xlane.xlu0 %883
        %885 = vadd.xlane.f32.xlu0 %v866
        %v886 = vpop.xlane.xlu0 %885
        %887 = vadd.xlane.f32.xlu0 %v867
        %v888 = vpop.xlane.xlu0 %887
        %889 = vadd.xlane.f32.xlu0 %v868
        %v890 = vpop.xlane.xlu0 %889
        %891 = vadd.xlane.f32.xlu0 %v869
        %v892 = vpop.xlane.xlu0 %891
        %893 = vadd.xlane.f32.xlu0 %v870
        %v894 = vpop.xlane.xlu0 %893
        %895 = vadd.xlane.f32.xlu0 %v871
        %v896 = vpop.xlane.xlu0 %895
        %897 = vadd.xlane.f32.xlu0 %v872
        %v898 = vpop.xlane.xlu0 %897
        %899 = vadd.xlane.f32.xlu0 %v873
        %v900 = vpop.xlane.xlu0 %899
        %901 = vadd.xlane.f32.xlu0 %v874
        %v902 = vpop.xlane.xlu0 %901
        %903 = vadd.xlane.f32.xlu0 %v875
        %v904 = vpop.xlane.xlu0 %903
        %905 = vadd.xlane.f32.xlu0 %v876
        %v906 = vpop.xlane.xlu0 %905
        %907 = vadd.xlane.f32.xlu0 %v877
        %v908 = vpop.xlane.xlu0 %907
        %909 = vadd.xlane.f32.xlu0 %v878
        %v910 = vpop.xlane.xlu0 %909
        %v911 = vadd.f32 %v880, 1e-12
        %v912 = vadd.f32 %v882, 1e-12
        %v913 = vadd.f32 %v884, 1e-12
        %v914 = vadd.f32 %v886, 1e-12
        %v915 = vadd.f32 %v888, 1e-12
        %v916 = vadd.f32 %v890, 1e-12
        %v917 = vadd.f32 %v892, 1e-12
        %v918 = vadd.f32 %v894, 1e-12
        %v919 = vadd.f32 %v896, 1e-12
        %v920 = vadd.f32 %v898, 1e-12
        %v921 = vadd.f32 %v900, 1e-12
        %v922 = vadd.f32 %v902, 1e-12
        %v923 = vadd.f32 %v904, 1e-12
        %v924 = vadd.f32 %v906, 1e-12
        %v925 = vadd.f32 %v908, 1e-12
        %v926 = vadd.f32 %v910, 1e-12
        %v927 = vrsqrt.pop %v911
        %v928 = vrsqrt.pop %v912
        %v929 = vrsqrt.pop %v913
        %v930 = vrsqrt.pop %v914
        %v931 = vrsqrt.pop %v915
        %v932 = vrsqrt.pop %v916
        %v933 = vrsqrt.pop %v917
        %v934 = vrsqrt.pop %v918
        %v935 = vrsqrt.pop %v919
        %v936 = vrsqrt.pop %v920
        %v937 = vrsqrt.pop %v921
        %v938 = vrsqrt.pop %v922
        %v939 = vrsqrt.pop %v923
        %v940 = vrsqrt.pop %v924
        %v941 = vrsqrt.pop %v925
        %v942 = vrsqrt.pop %v926
        %v943 = vmul.f32 %v692, %v927
        %v944 = vmul.f32 %v697, %v928
        %v945 = vmul.f32 %v702, %v929
        %v946 = vmul.f32 %v707, %v930
        %v947 = vmul.f32 %v712, %v931
        %v948 = vmul.f32 %v717, %v932
        %v949 = vmul.f32 %v722, %v933
        %v950 = vmul.f32 %v727, %v934
        %v951 = vmul.f32 %v732, %v935
        %v952 = vmul.f32 %v737, %v936
        %v953 = vmul.f32 %v742, %v937
        %v954 = vmul.f32 %v747, %v938
        %v955 = vmul.f32 %v752, %v939
        %v956 = vmul.f32 %v757, %v940
        %v957 = vmul.f32 %v762, %v941
        %v958 = vmul.f32 %v767, %v942
        %v959 = vmul.f32 %v860, %v860
        %960 = vadd.xlane.f32.xlu0 %v959
        %v961 = vpop.xlane.xlu0 %960
        %v962 = vadd.f32 %v961, 1e-12
        %v963 = vrsqrt.pop %v962
        %v964 = vmul.f32 %v860, %v963
        %s965 = sld [smem:[#allocation2]]
        %v966 = vstv %s965
        %v967 = vmul.f32 %v964, %v966
        %968 = vmatprep.subr.mxu0 0.0
        %969 = vmatpush1.xpose.msra.mxu0 %v943
        %970 = vmatprep.subr.mxu0 0.0
        %971 = vmatpush1.xpose.msra.mxu0 %v944
        %972 = vmatprep.subr.mxu0 0.0
        %973 = vmatpush1.xpose.msra.mxu0 %v945
        %974 = vmatprep.subr.mxu0 0.0
        %975 = vmatpush1.xpose.msra.mxu0 %v946
        %976 = vmatprep.subr.mxu0 0.0
        %977 = vmatpush1.xpose.msra.mxu0 %v947
        %978 = vmatprep.subr.mxu0 0.0
        %979 = vmatpush1.xpose.msra.mxu0 %v948
        %980 = vmatprep.subr.mxu0 0.0
        %981 = vmatpush1.xpose.msra.mxu0 %v949
        %982 = vmatprep.subr.mxu0 0.0
        %983 = vmatpush1.xpose.msra.mxu0 %v950
        %984 = vmatprep.subr.mxu0 0.0
        %985 = vmatpush1.xpose.msra.mxu0 %v951
        %986 = vmatprep.subr.mxu0 0.0
        %987 = vmatpush1.xpose.msra.mxu0 %v952
        %988 = vmatprep.subr.mxu0 0.0
        %989 = vmatpush1.xpose.msra.mxu0 %v953
        %990 = vmatprep.subr.mxu0 0.0
        %991 = vmatpush1.xpose.msra.mxu0 %v954
        %992 = vmatprep.subr.mxu0 0.0
        %993 = vmatpush1.xpose.msra.mxu0 %v955
        %994 = vmatprep.subr.mxu0 0.0
        %995 = vmatpush1.xpose.msra.mxu0 %v956
        %996 = vmatprep.subr.mxu0 0.0
        %997 = vmatpush1.xpose.msra.mxu0 %v957
        %998 = vmatprep.subr.mxu0 0.0
        %999 = vmatpush1.xpose.msra.mxu0 %v958
        %1000 = vmatprep.subr.mxu0 0.0
        %1001 = vmatpush1.xpose.msra.mxu0 0.0
        %1002 = vmatprep.subr.mxu0 0.0
        %1003 = vmatpush1.xpose.msra.mxu0 0.0
        %1004 = vmatprep.subr.mxu0 0.0
        %1005 = vmatpush1.xpose.msra.mxu0 0.0
        %1006 = vmatprep.subr.mxu0 0.0
        %1007 = vmatpush1.xpose.msra.mxu0 0.0
        %1008 = vmatprep.subr.mxu0 0.0
        %1009 = vmatpush1.xpose.msra.mxu0 0.0
        %1010 = vmatprep.subr.mxu0 0.0
        %1011 = vmatpush1.xpose.msra.mxu0 0.0
        %1012 = vmatprep.subr.mxu0 0.0
        %1013 = vmatpush1.xpose.msra.mxu0 0.0
        %1014 = vmatprep.subr.mxu0 0.0
        %1015 = vmatpush1.xpose.msra.mxu0 0.0
        %1016 = vmatprep.subr.mxu0 0.0
        %1017 = vmatpush1.xpose.msra.mxu0 0.0
        %1018 = vmatprep.subr.mxu0 0.0
        %1019 = vmatpush1.xpose.msra.mxu0 0.0
        %1020 = vmatprep.subr.mxu0 0.0
        %1021 = vmatpush1.xpose.msra.mxu0 0.0
        %1022 = vmatprep.subr.mxu0 0.0
        %1023 = vmatpush1.xpose.msra.mxu0 0.0
        %1024 = vmatprep.subr.mxu0 0.0
        %1025 = vmatpush1.xpose.msra.mxu0 0.0
        %1026 = vmatprep.subr.mxu0 0.0
        %1027 = vmatpush1.xpose.msra.mxu0 0.0
        %1028 = vmatprep.subr.mxu0 0.0
        %1029 = vmatpush1.xpose.msra.mxu0 0.0
        %1030 = vmatprep.subr.mxu0 0.0
        %1031 = vmatpush1.xpose.msra.mxu0 0.0
        %1032 = vmatprep.mubr.f32.mxu0 0.0
        %1033 = vmatmul.mubr.f32.gmra.mrb[0].mxu0 %v967
        %v1034 = vpop.f32.mrb[0].mxu0
        %v1035 = vadd.f32 0.0, %v1034
        %v1036 = vpop.f32.mrb[0].mxu0
        %1037 = vdwg.mxu0
        %1038 = vst [vmem:[%s363] sm:$0xff] %v1035
        %s1039 = sand.u32 %s194, 1
        %s1040 = scalar_lea.sflag [#allocation5], %s1039
        %s1041 = sand.u32 %s194, 1
        %s1042 = smul.addr %s1041, 8
        %s1043 = scalar_lea.vmem [#allocation11], %s1042
        // Predicated region
        $region65: #{tpu_custom_call.1} parent=47 // pred_check
          %p1044 = pneg %p204
        $region66: #{tpu_custom_call.1} parent=47 // pred_check_branch
          %1046 = sbr.rel (%p1044) target = $region68
        $region67: #{tpu_custom_call.1} parent=47 // pred_region
          %s1048 = ssub.s32 128, 128
          %1049 = vsyncadd %s1040, %s1048
          %s1050 = smul.addr %s29, 128
          %s1051 = scalar_lea.hbm %s7, %s1050
          %s1053 = sshll.u32 %s1043, 4
          %s1054 = int_to_ptr.vmem [resolvable:$true] %s1053
          %1056 = dma.vmem_to_hbm [thread:$0]  %s1054, 128, %s1051, %s1040
        $region68: #{tpu_custom_call.1} parent=47 // pred_fallthru
          _
      $region48: #{tpu_custom_call.1} parent=5 // pred_fallthru
        _
      %p1057 = scmp.le.s32.totalorder 2, %s24
      // Predicated region
      $region69: #{tpu_custom_call.1} parent=5 // pred_check
        %p1058 = pneg %p1057
      $region70: #{tpu_custom_call.1} parent=5 // pred_check_branch
        %1060 = sbr.rel (%p1058) target = $region72
      $region71: #{tpu_custom_call.1} parent=5 // pred_region
        %s1061 = ssub.s32 %s24, 2
        // Predicated region
        $region73: #{tpu_custom_call.1} parent=71 // pred_check
          %p1062 = pneg %p210
        $region74: #{tpu_custom_call.1} parent=71 // pred_check_branch
          %1064 = sbr.rel (%p1062) target = $region76
        $region75: #{tpu_custom_call.1} parent=71 // pred_region
          %s1065 = sand.u32 %s195, 1
          %s1066 = scalar_lea.sflag [#allocation5], %s1065
          %s1067 = sand.u32 %s195, 1
          %s1068 = smul.addr %s1067, 8
          %s1069 = scalar_lea.vmem [#allocation11], %s1068
          %1070 = dma.done %s1066, 128
        $region76: #{tpu_custom_call.1} parent=71 // pred_fallthru
          _
      $region72: #{tpu_custom_call.1} parent=5 // pred_fallthru
        _
    $region6: #{tpu_custom_call.1} parent=1 // loop_footer
      %s28 = sadd.s32 1, %s24
    $region7: #{tpu_custom_call.1} parent=1 // loop_footer_branch
      %23 = sbr.rel target = $region3
    $region8: #{tpu_custom_call.1} parent=1 // loop_exit
      _
    %1071 = vsyncpa [#allocation4], 1
    %s1072 = scalar_lea.sflag [#allocation4], 1
    %1073 = vsyncpa %s1072, 1
    %1074 = vsyncpa [#allocation7], 1
    %s1075 = scalar_lea.sflag [#allocation7], 1
    %1076 = vsyncpa %s1075, 1
    %1077 = vsyncpa [#allocation10], 1
    %1078 = vsyncpa [#allocation5], 1
    %s1079 = scalar_lea.sflag [#allocation5], 1
    %1080 = vsyncpa %s1079, 1

</llo_original>
